<compile_context>
chip_gen: v5e
topology: v5e:2x2
jax: 0.10.0
libtpu: 0.0.40
codegen_flags: <defaults>
</compile_context>

<pallas_src>
import functools
import math

import jax
import jax.numpy as jnp
from jax.experimental import pallas as pl
from jax.experimental.pallas import tpu as pltpu


def _perceiver_attn_kernel(lat_ref, hs_ref, wq_ref, wk_ref, wv_ref, wo_ref,
                           out_ref, *, num_heads, num_groups, head_dim):
    """One block of TB batch elements per grid step.

    lat_ref : (TB, Qp, H)   latents (queries), Qp sublane-padded
    hs_ref  : (TB, KV, H)   [context ; latents]  (built in the wrapper)
    wq_ref  : (H, nh*hd)    whole-array resident in VMEM (single copy)
    wk_ref  : (H, ng*hd)
    wv_ref  : (H, ng*hd)
    wo_ref  : (nh*hd, H)
    out_ref : (TB, Qp, H)
    """
    in_dtype = lat_ref.dtype
    tb, qp, hidden = lat_ref.shape
    kv = hs_ref.shape[1]
    rep = num_heads // num_groups
    scale = 1.0 / math.sqrt(head_dim)

    # Flatten the batch block into rows: one big M for every projection matmul.
    lat2 = lat_ref[...].reshape(tb * qp, hidden)
    hs2 = hs_ref[...].reshape(tb * kv, hidden)

    # ---- fused projections: ONE wide matmul each (fills the MXU N dim) ------
    q_all = jnp.dot(lat2, wq_ref[...],
                    preferred_element_type=jnp.float32).astype(in_dtype)
    k_all = jnp.dot(hs2, wk_ref[...],
                    preferred_element_type=jnp.float32).astype(in_dtype)
    v_all = jnp.dot(hs2, wv_ref[...],
                    preferred_element_type=jnp.float32).astype(in_dtype)

    # ---- GQA attention: per-head lane slices of the wide projections --------
    # Static loops: head/group counts are small for a Perceiver resampler and
    # the per-head intermediates (scores / probs) are not live across
    # iterations, so register/VMEM pressure stays bounded.
    # TODO(synk): for very large ng / long KV, move the group axis into the
    # grid (per-group weight BlockSpec) and add flash-style KV tiling.
    head_out = []
    for g in range(num_groups):
        k_g = k_all[:, g * head_dim:(g + 1) * head_dim].reshape(tb, kv, head_dim)
        v_g = v_all[:, g * head_dim:(g + 1) * head_dim].reshape(tb, kv, head_dim)
        for r in range(rep):
            h = g * rep + r
            q_h = q_all[:, h * head_dim:(h + 1) * head_dim].reshape(
                tb, qp, head_dim)
            s = jnp.einsum('bqd,bkd->bqk', q_h, k_g,
                           preferred_element_type=jnp.float32) * scale
            s = s - jnp.max(s, axis=-1, keepdims=True)
            p = jnp.exp(s)
            p = p / jnp.sum(p, axis=-1, keepdims=True)   # exact divide, fp32
            p = p.astype(in_dtype)    # module casts attn weights to q.dtype
            o_h = jnp.einsum('bqk,bkd->bqd', p, v_g,
                             preferred_element_type=jnp.float32)
            head_out.append(o_h.astype(in_dtype).reshape(tb * qp, head_dim))

    # ---- fused output projection --------------------------------------------
    # Lane-concat in head order == the PyTorch reshape to (.., nh*hd); then
    # ONE (tb*qp, nh*hd) x (nh*hd, H) MXU matmul (K = nh*hd fills the MXU).
    o_cat = jnp.concatenate(head_out, axis=-1)
    out = jnp.dot(o_cat, wo_ref[...], preferred_element_type=jnp.float32)
    out_ref[...] = out.reshape(tb, qp, hidden).astype(out_ref.dtype)


def _vmem_limit_bytes():
    cap = 64 * 1024 * 1024
    try:
        info = pltpu.get_tpu_info()
        cap = int(getattr(info, "vmem_capacity_bytes", cap))
    except Exception:
        pass
    # Leave headroom for Mosaic internal scratch; ~56 MiB on v7x (64 MiB
    # physical), ~100 MiB on v5e/v6e (128 MiB physical).
    return int(min(cap - 8 * 1024 * 1024, 100 * 1024 * 1024))


def _pick_batch_block(batch, q_rows, kv_rows, hidden, itemsize, vmem_limit):
    """Largest divisor of `batch` whose double-buffered activation blocks fit
    ~1/4 of the VMEM budget while keeping >= 2 grid steps (v7x has 2 TCs)."""
    budget = vmem_limit // 4
    best = 1
    for tb in range(1, batch + 1):
        if batch % tb:
            continue
        if batch >= 2 and batch // tb < 2:
            continue
        act_bytes = 2 * tb * (2 * q_rows + kv_rows) * hidden * itemsize
        if act_bytes <= budget:
            best = tb
    return best


def perceiver_attention(latents, context, wq, wk, wv, wo,
                        *, num_heads, num_groups, head_dim):
    assert num_heads % num_groups == 0, \
        "n_heads must be divisible by n_query_groups"
    B, Q, H = latents.shape
    _, S, _ = context.shape
    KV = S + Q
    dtype = latents.dtype
    itemsize = jnp.dtype(dtype).itemsize

    # hidden_states = [context ; latents] -- built once here (XLA concat), so
    # the kernel never stitches projections along sublanes.
    hs = jnp.concatenate([context, latents], axis=1)            # (B, KV, H)

    # Pad query rows to the dtype's sublane granule (8 fp32 / 16 bf16 / 32 i8)
    # so in-kernel row merges & slices stay tile-aligned.  Only the query side
    # is padded -- hs keeps the un-padded latents, so softmax normalization is
    # unchanged; pad rows are sliced off below.
    sub = max(8, 32 // itemsize)
    Qp = ((Q + sub - 1) // sub) * sub
    lat_q = latents if Qp == Q else jnp.pad(
        latents, ((0, 0), (0, Qp - Q), (0, 0)))

    vmem_limit = _vmem_limit_bytes()
    tb = _pick_batch_block(B, Qp, KV, H, itemsize, vmem_limit)

    kernel = functools.partial(
        _perceiver_attn_kernel,
        num_heads=num_heads, num_groups=num_groups, head_dim=head_dim)

    # Weights are constant across the grid -> whole-array resident in VMEM
    # (single copy, no per-step double-buffered DMA).
    weight_spec = pl.BlockSpec(memory_space=pltpu.MemorySpace.VMEM)

    flops = 2 * B * (Qp * H * num_heads * head_dim            # q_proj
                     + 2 * KV * H * num_groups * head_dim     # k_proj + v_proj
                     + Qp * num_heads * head_dim * H)         # o_proj
    flops += 4 * B * num_heads * Qp * KV * head_dim           # scores + attn@v
    bytes_accessed = itemsize * (
        B * (2 * Qp + KV) * H
        + H * num_heads * head_dim
        + 2 * H * num_groups * head_dim
        + num_heads * head_dim * H)
    cost = pl.CostEstimate(flops=int(flops),
                           transcendentals=int(B * num_heads * Qp * KV),
                           bytes_accessed=int(bytes_accessed))

    out = pl.pallas_call(
        kernel,
        out_shape=jax.ShapeDtypeStruct((B, Qp, H), dtype),
        grid_spec=pltpu.PrefetchScalarGridSpec(
            num_scalar_prefetch=0,
            grid=(B // tb,),
            in_specs=[
                pl.BlockSpec((tb, Qp, H), lambda b: (b, 0, 0)),   # latents
                pl.BlockSpec((tb, KV, H), lambda b: (b, 0, 0)),   # [ctx; lat]
                weight_spec,                                      # Wq (H, nh*hd)
                weight_spec,                                      # Wk (H, ng*hd)
                weight_spec,                                      # Wv (H, ng*hd)
                weight_spec,                                      # Wo (nh*hd, H)
            ],
            out_specs=pl.BlockSpec((tb, Qp, H), lambda b: (b, 0, 0)),
        ),
        compiler_params=pltpu.CompilerParams(
            dimension_semantics=("parallel",),
            vmem_limit_bytes=vmem_limit),
        cost_estimate=cost,
    )(lat_q, hs, wq, wk, wv, wo)

    return out if Qp == Q else out[:, :Q, :]


def perceiver_attention_ref(latents, context, wq, wk, wv, wo,
                            *, num_heads, num_groups, head_dim):
    """Pure-JAX reference mirroring the PyTorch forward."""
    B, Q, H = latents.shape
    S = context.shape[1]
    KV = S + Q
    hs = jnp.concatenate([context, latents], axis=1)
    q = (latents @ wq).reshape(B, Q, num_heads, head_dim).transpose(0, 2, 1, 3)
    k = (hs @ wk).reshape(B, KV, num_groups, head_dim).transpose(0, 2, 1, 3)
    v = (hs @ wv).reshape(B, KV, num_groups, head_dim).transpose(0, 2, 1, 3)
    rep = num_heads // num_groups
    k = jnp.repeat(k, rep, axis=1)
    v = jnp.repeat(v, rep, axis=1)
    w = jnp.einsum("bhqd,bhkd->bhqk", q, k) / math.sqrt(head_dim)
    w = jax.nn.softmax(w.astype(jnp.float32), axis=-1).astype(q.dtype)
    o = jnp.einsum("bhqk,bhkd->bhqd", w, v)
    o = o.transpose(0, 2, 1, 3).reshape(B, Q, num_heads * head_dim)
    return o @ wo


if __name__ == "__main__":
    # Small config consistent with the module's __init__:
    hidden_size = 32
    n_heads = 4
    head_dim = 8
    n_query_groups = 2
    batch = 2
    n_latents = 8          # q_len
    seq = 16               # context length

    key = jax.random.PRNGKey(0)
    k_lat, k_ctx, k_q, k_k, k_v, k_o = jax.random.split(key, 6)

    latents = jax.random.normal(k_lat, (batch, n_latents, hidden_size),
                                jnp.float32)
    context = jax.random.normal(k_ctx, (batch, seq, hidden_size), jnp.float32)

    # Deterministic synthetic weights, stored as (in_features, out_features).
    s = 1.0 / math.sqrt(hidden_size)
    wq = jax.random.normal(k_q, (hidden_size, n_heads * head_dim),
                           jnp.float32) * s
    wk = jax.random.normal(k_k, (hidden_size, n_query_groups * head_dim),
                           jnp.float32) * s
    wv = jax.random.normal(k_v, (hidden_size, n_query_groups * head_dim),
                           jnp.float32) * s
    wo = jax.random.normal(k_o, (n_heads * head_dim, hidden_size),
                           jnp.float32) * s

    out = perceiver_attention(
        latents, context, wq, wk, wv, wo,
        num_heads=n_heads, num_groups=n_query_groups, head_dim=head_dim)
    out = jax.block_until_ready(out)

    ref = perceiver_attention_ref(
        latents, context, wq, wk, wv, wo,
        num_heads=n_heads, num_groups=n_query_groups, head_dim=head_dim)

    assert out.shape == (batch, n_latents, hidden_size)
    # Exact softmax divide (no approx reciprocal anymore); remaining tolerance
    # only covers MXU fp32 (multi-pass bf16) matmul rounding vs the XLA ref.
    assert jnp.allclose(out, ref, atol=1e-3, rtol=1e-3), (
        f"max abs err {jnp.max(jnp.abs(out - ref))}")
    print("KERNEL_OK")
</pallas_src>

<mosaic_0001>
module attributes {stable_mosaic.version = 11 : i64} {
  func.func @_perceiver_attn_kernel(%arg0: i32, %arg1: memref<1x8x32xf32, #tpu.memory_space<vmem>>, %arg2: memref<1x24x32xf32, #tpu.memory_space<vmem>>, %arg3: memref<32x32xf32, #tpu.memory_space<vmem>>, %arg4: memref<32x16xf32, #tpu.memory_space<vmem>>, %arg5: memref<32x16xf32, #tpu.memory_space<vmem>>, %arg6: memref<32x32xf32, #tpu.memory_space<vmem>>, %arg7: memref<1x8x32xf32, #tpu.memory_space<vmem>>) attributes {dimension_semantics = [#tpu.dimension_semantics<parallel>], iteration_bounds = array<i64: 2>, scalar_prefetch = 0 : i64, scratch_operands = 0 : i64, tpu.core_type = #tpu.core_type<tc>, window_params = [{transform_indices = @transform_0, window_bounds = array<i64: 1, 8, 32>}, {transform_indices = @transform_1, window_bounds = array<i64: 1, 24, 32>}, {pipeline_mode = #tpu.pipeline_mode<synchronous>, transform_indices = @transform_2, window_bounds = array<i64: 32, 32>}, {pipeline_mode = #tpu.pipeline_mode<synchronous>, transform_indices = @transform_3, window_bounds = array<i64: 32, 16>}, {pipeline_mode = #tpu.pipeline_mode<synchronous>, transform_indices = @transform_4, window_bounds = array<i64: 32, 16>}, {pipeline_mode = #tpu.pipeline_mode<synchronous>, transform_indices = @transform_5, window_bounds = array<i64: 32, 32>}, {transform_indices = @transform_6, window_bounds = array<i64: 1, 8, 32>}]} {
    %c0 = arith.constant 0 : index
    %c0_0 = arith.constant 0 : index
    %c0_1 = arith.constant 0 : index
    %0 = vector.load %arg1[%c0, %c0_0, %c0_1] : memref<1x8x32xf32, #tpu.memory_space<vmem>>, vector<1x8x32xf32>
    %1 = vector.shape_cast %0 : vector<1x8x32xf32> to vector<8x32xf32>
    %c0_2 = arith.constant 0 : index
    %c0_3 = arith.constant 0 : index
    %c0_4 = arith.constant 0 : index
    %2 = vector.load %arg2[%c0_2, %c0_3, %c0_4] : memref<1x24x32xf32, #tpu.memory_space<vmem>>, vector<1x24x32xf32>
    %3 = vector.shape_cast %2 : vector<1x24x32xf32> to vector<24x32xf32>
    %c0_5 = arith.constant 0 : index
    %c0_6 = arith.constant 0 : index
    %4 = vector.load %arg3[%c0_5, %c0_6] : memref<32x32xf32, #tpu.memory_space<vmem>>, vector<32x32xf32>
    %cst = arith.constant dense<0.000000e+00> : vector<8x32xf32>
    %5 = tpu.matmul %1, %4, %cst {dimension_numbers = #tpu.dot_dimension_numbers<[1], [0], [0], [1], [0, 0, 1, 1], [], []>} : vector<8x32xf32>, vector<32x32xf32>, vector<8x32xf32> -> vector<8x32xf32>
    %c0_7 = arith.constant 0 : index
    %c0_8 = arith.constant 0 : index
    %6 = vector.load %arg4[%c0_7, %c0_8] : memref<32x16xf32, #tpu.memory_space<vmem>>, vector<32x16xf32>
    %cst_9 = arith.constant dense<0.000000e+00> : vector<24x16xf32>
    %7 = tpu.matmul %3, %6, %cst_9 {dimension_numbers = #tpu.dot_dimension_numbers<[1], [0], [0], [1], [0, 0, 1, 1], [], []>} : vector<24x32xf32>, vector<32x16xf32>, vector<24x16xf32> -> vector<24x16xf32>
    %c0_10 = arith.constant 0 : index
    %c0_11 = arith.constant 0 : index
    %8 = vector.load %arg5[%c0_10, %c0_11] : memref<32x16xf32, #tpu.memory_space<vmem>>, vector<32x16xf32>
    %cst_12 = arith.constant dense<0.000000e+00> : vector<24x16xf32>
    %9 = tpu.matmul %3, %8, %cst_12 {dimension_numbers = #tpu.dot_dimension_numbers<[1], [0], [0], [1], [0, 0, 1, 1], [], []>} : vector<24x32xf32>, vector<32x16xf32>, vector<24x16xf32> -> vector<24x16xf32>
    %10 = vector.extract_strided_slice %7 {offsets = [0, 0], sizes = [24, 8], strides = [1, 1]} : vector<24x16xf32> to vector<24x8xf32>
    %11 = vector.shape_cast %10 : vector<24x8xf32> to vector<1x24x8xf32>
    %12 = vector.extract_strided_slice %9 {offsets = [0, 0], sizes = [24, 8], strides = [1, 1]} : vector<24x16xf32> to vector<24x8xf32>
    %13 = vector.shape_cast %12 : vector<24x8xf32> to vector<1x24x8xf32>
    %14 = vector.extract_strided_slice %5 {offsets = [0, 0], sizes = [8, 8], strides = [1, 1]} : vector<8x32xf32> to vector<8x8xf32>
    %15 = vector.shape_cast %14 : vector<8x8xf32> to vector<1x8x8xf32>
    "tpu.trace_start"() <{level = 10 : i32, message = "bqd,bkd->bqk"}> : () -> ()
    %cst_13 = arith.constant dense<0.000000e+00> : vector<1x8x24xf32>
    %16 = tpu.matmul %15, %11, %cst_13 {dimension_numbers = #tpu.dot_dimension_numbers<[2], [2], [1], [1], [0, 0, 0, 1, 1, 1], [0], [0]>} : vector<1x8x8xf32>, vector<1x24x8xf32>, vector<1x8x24xf32> -> vector<1x8x24xf32>
    "tpu.trace_stop"() : () -> ()
    %cst_14 = arith.constant 0.353553385 : f32
    %17 = vector.broadcast %cst_14 : f32 to vector<1x8x24xf32>
    %18 = arith.mulf %16, %17 : vector<1x8x24xf32>
    %cst_15 = arith.constant dense<0xFF800000> : vector<1x8xf32>
    %19 = vector.multi_reduction <maximumf>, %18, %cst_15 [2] : vector<1x8x24xf32> to vector<1x8xf32>
    %20 = vector.shape_cast %19 : vector<1x8xf32> to vector<1x8x1xf32>
    %21 = vector.broadcast %20 : vector<1x8x1xf32> to vector<1x8x24xf32>
    %22 = arith.subf %18, %21 : vector<1x8x24xf32>
    %23 = math.exp %22 : vector<1x8x24xf32>
    %cst_16 = arith.constant dense<0.000000e+00> : vector<1x8xf32>
    %24 = vector.multi_reduction <add>, %23, %cst_16 [2] : vector<1x8x24xf32> to vector<1x8xf32>
    %25 = vector.shape_cast %24 : vector<1x8xf32> to vector<1x8x1xf32>
    %26 = vector.broadcast %25 : vector<1x8x1xf32> to vector<1x8x24xf32>
    %27 = arith.divf %23, %26 : vector<1x8x24xf32>
    "tpu.trace_start"() <{level = 10 : i32, message = "bqk,bkd->bqd"}> : () -> ()
    %cst_17 = arith.constant dense<0.000000e+00> : vector<1x8x8xf32>
    %28 = tpu.matmul %27, %13, %cst_17 {dimension_numbers = #tpu.dot_dimension_numbers<[2], [1], [1], [2], [0, 0, 0, 1, 1, 2], [0], [0]>} : vector<1x8x24xf32>, vector<1x24x8xf32>, vector<1x8x8xf32> -> vector<1x8x8xf32>
    "tpu.trace_stop"() : () -> ()
    %29 = vector.shape_cast %28 : vector<1x8x8xf32> to vector<8x8xf32>
    %30 = vector.extract_strided_slice %5 {offsets = [0, 8], sizes = [8, 8], strides = [1, 1]} : vector<8x32xf32> to vector<8x8xf32>
    %31 = vector.shape_cast %30 : vector<8x8xf32> to vector<1x8x8xf32>
    "tpu.trace_start"() <{level = 10 : i32, message = "bqd,bkd->bqk"}> : () -> ()
    %cst_18 = arith.constant dense<0.000000e+00> : vector<1x8x24xf32>
    %32 = tpu.matmul %31, %11, %cst_18 {dimension_numbers = #tpu.dot_dimension_numbers<[2], [2], [1], [1], [0, 0, 0, 1, 1, 1], [0], [0]>} : vector<1x8x8xf32>, vector<1x24x8xf32>, vector<1x8x24xf32> -> vector<1x8x24xf32>
    "tpu.trace_stop"() : () -> ()
    %cst_19 = arith.constant 0.353553385 : f32
    %33 = vector.broadcast %cst_19 : f32 to vector<1x8x24xf32>
    %34 = arith.mulf %32, %33 : vector<1x8x24xf32>
    %cst_20 = arith.constant dense<0xFF800000> : vector<1x8xf32>
    %35 = vector.multi_reduction <maximumf>, %34, %cst_20 [2] : vector<1x8x24xf32> to vector<1x8xf32>
    %36 = vector.shape_cast %35 : vector<1x8xf32> to vector<1x8x1xf32>
    %37 = vector.broadcast %36 : vector<1x8x1xf32> to vector<1x8x24xf32>
    %38 = arith.subf %34, %37 : vector<1x8x24xf32>
    %39 = math.exp %38 : vector<1x8x24xf32>
    %cst_21 = arith.constant dense<0.000000e+00> : vector<1x8xf32>
    %40 = vector.multi_reduction <add>, %39, %cst_21 [2] : vector<1x8x24xf32> to vector<1x8xf32>
    %41 = vector.shape_cast %40 : vector<1x8xf32> to vector<1x8x1xf32>
    %42 = vector.broadcast %41 : vector<1x8x1xf32> to vector<1x8x24xf32>
    %43 = arith.divf %39, %42 : vector<1x8x24xf32>
    "tpu.trace_start"() <{level = 10 : i32, message = "bqk,bkd->bqd"}> : () -> ()
    %cst_22 = arith.constant dense<0.000000e+00> : vector<1x8x8xf32>
    %44 = tpu.matmul %43, %13, %cst_22 {dimension_numbers = #tpu.dot_dimension_numbers<[2], [1], [1], [2], [0, 0, 0, 1, 1, 2], [0], [0]>} : vector<1x8x24xf32>, vector<1x24x8xf32>, vector<1x8x8xf32> -> vector<1x8x8xf32>
    "tpu.trace_stop"() : () -> ()
    %45 = vector.shape_cast %44 : vector<1x8x8xf32> to vector<8x8xf32>
    %46 = vector.extract_strided_slice %7 {offsets = [0, 8], sizes = [24, 8], strides = [1, 1]} : vector<24x16xf32> to vector<24x8xf32>
    %47 = vector.shape_cast %46 : vector<24x8xf32> to vector<1x24x8xf32>
    %48 = vector.extract_strided_slice %9 {offsets = [0, 8], sizes = [24, 8], strides = [1, 1]} : vector<24x16xf32> to vector<24x8xf32>
    %49 = vector.shape_cast %48 : vector<24x8xf32> to vector<1x24x8xf32>
    %50 = vector.extract_strided_slice %5 {offsets = [0, 16], sizes = [8, 8], strides = [1, 1]} : vector<8x32xf32> to vector<8x8xf32>
    %51 = vector.shape_cast %50 : vector<8x8xf32> to vector<1x8x8xf32>
    "tpu.trace_start"() <{level = 10 : i32, message = "bqd,bkd->bqk"}> : () -> ()
    %cst_23 = arith.constant dense<0.000000e+00> : vector<1x8x24xf32>
    %52 = tpu.matmul %51, %47, %cst_23 {dimension_numbers = #tpu.dot_dimension_numbers<[2], [2], [1], [1], [0, 0, 0, 1, 1, 1], [0], [0]>} : vector<1x8x8xf32>, vector<1x24x8xf32>, vector<1x8x24xf32> -> vector<1x8x24xf32>
    "tpu.trace_stop"() : () -> ()
    %cst_24 = arith.constant 0.353553385 : f32
    %53 = vector.broadcast %cst_24 : f32 to vector<1x8x24xf32>
    %54 = arith.mulf %52, %53 : vector<1x8x24xf32>
    %cst_25 = arith.constant dense<0xFF800000> : vector<1x8xf32>
    %55 = vector.multi_reduction <maximumf>, %54, %cst_25 [2] : vector<1x8x24xf32> to vector<1x8xf32>
    %56 = vector.shape_cast %55 : vector<1x8xf32> to vector<1x8x1xf32>
    %57 = vector.broadcast %56 : vector<1x8x1xf32> to vector<1x8x24xf32>
    %58 = arith.subf %54, %57 : vector<1x8x24xf32>
    %59 = math.exp %58 : vector<1x8x24xf32>
    %cst_26 = arith.constant dense<0.000000e+00> : vector<1x8xf32>
    %60 = vector.multi_reduction <add>, %59, %cst_26 [2] : vector<1x8x24xf32> to vector<1x8xf32>
    %61 = vector.shape_cast %60 : vector<1x8xf32> to vector<1x8x1xf32>
    %62 = vector.broadcast %61 : vector<1x8x1xf32> to vector<1x8x24xf32>
    %63 = arith.divf %59, %62 : vector<1x8x24xf32>
    "tpu.trace_start"() <{level = 10 : i32, message = "bqk,bkd->bqd"}> : () -> ()
    %cst_27 = arith.constant dense<0.000000e+00> : vector<1x8x8xf32>
    %64 = tpu.matmul %63, %49, %cst_27 {dimension_numbers = #tpu.dot_dimension_numbers<[2], [1], [1], [2], [0, 0, 0, 1, 1, 2], [0], [0]>} : vector<1x8x24xf32>, vector<1x24x8xf32>, vector<1x8x8xf32> -> vector<1x8x8xf32>
    "tpu.trace_stop"() : () -> ()
    %65 = vector.shape_cast %64 : vector<1x8x8xf32> to vector<8x8xf32>
    %66 = vector.extract_strided_slice %5 {offsets = [0, 24], sizes = [8, 8], strides = [1, 1]} : vector<8x32xf32> to vector<8x8xf32>
    %67 = vector.shape_cast %66 : vector<8x8xf32> to vector<1x8x8xf32>
    "tpu.trace_start"() <{level = 10 : i32, message = "bqd,bkd->bqk"}> : () -> ()
    %cst_28 = arith.constant dense<0.000000e+00> : vector<1x8x24xf32>
    %68 = tpu.matmul %67, %47, %cst_28 {dimension_numbers = #tpu.dot_dimension_numbers<[2], [2], [1], [1], [0, 0, 0, 1, 1, 1], [0], [0]>} : vector<1x8x8xf32>, vector<1x24x8xf32>, vector<1x8x24xf32> -> vector<1x8x24xf32>
    "tpu.trace_stop"() : () -> ()
    %cst_29 = arith.constant 0.353553385 : f32
    %69 = vector.broadcast %cst_29 : f32 to vector<1x8x24xf32>
    %70 = arith.mulf %68, %69 : vector<1x8x24xf32>
    %cst_30 = arith.constant dense<0xFF800000> : vector<1x8xf32>
    %71 = vector.multi_reduction <maximumf>, %70, %cst_30 [2] : vector<1x8x24xf32> to vector<1x8xf32>
    %72 = vector.shape_cast %71 : vector<1x8xf32> to vector<1x8x1xf32>
    %73 = vector.broadcast %72 : vector<1x8x1xf32> to vector<1x8x24xf32>
    %74 = arith.subf %70, %73 : vector<1x8x24xf32>
    %75 = math.exp %74 : vector<1x8x24xf32>
    %cst_31 = arith.constant dense<0.000000e+00> : vector<1x8xf32>
    %76 = vector.multi_reduction <add>, %75, %cst_31 [2] : vector<1x8x24xf32> to vector<1x8xf32>
    %77 = vector.shape_cast %76 : vector<1x8xf32> to vector<1x8x1xf32>
    %78 = vector.broadcast %77 : vector<1x8x1xf32> to vector<1x8x24xf32>
    %79 = arith.divf %75, %78 : vector<1x8x24xf32>
    "tpu.trace_start"() <{level = 10 : i32, message = "bqk,bkd->bqd"}> : () -> ()
    %cst_32 = arith.constant dense<0.000000e+00> : vector<1x8x8xf32>
    %80 = tpu.matmul %79, %49, %cst_32 {dimension_numbers = #tpu.dot_dimension_numbers<[2], [1], [1], [2], [0, 0, 0, 1, 1, 2], [0], [0]>} : vector<1x8x24xf32>, vector<1x24x8xf32>, vector<1x8x8xf32> -> vector<1x8x8xf32>
    "tpu.trace_stop"() : () -> ()
    %81 = vector.shape_cast %80 : vector<1x8x8xf32> to vector<8x8xf32>
    %82 = tpu.concatenate %29, %45, %65, %81 in 1 : vector<8x8xf32>, vector<8x8xf32>, vector<8x8xf32>, vector<8x8xf32> -> vector<8x32xf32>
    %c0_33 = arith.constant 0 : index
    %c0_34 = arith.constant 0 : index
    %83 = vector.load %arg6[%c0_33, %c0_34] : memref<32x32xf32, #tpu.memory_space<vmem>>, vector<32x32xf32>
    %cst_35 = arith.constant dense<0.000000e+00> : vector<8x32xf32>
    %84 = tpu.matmul %82, %83, %cst_35 {dimension_numbers = #tpu.dot_dimension_numbers<[1], [0], [0], [1], [0, 0, 1, 1], [], []>} : vector<8x32xf32>, vector<32x32xf32>, vector<8x32xf32> -> vector<8x32xf32>
    %85 = vector.shape_cast %84 : vector<8x32xf32> to vector<1x8x32xf32>
    %c0_36 = arith.constant 0 : index
    %c0_37 = arith.constant 0 : index
    %c0_38 = arith.constant 0 : index
    %86 = vector.load %arg7[%c0_36, %c0_37, %c0_38] : memref<1x8x32xf32, #tpu.memory_space<vmem>>, vector<1x8x32xf32>
    tpu.vector_store %arg7[%c0_36, %c0_37, %c0_38], %85 {strides = array<i32>} : memref<1x8x32xf32, #tpu.memory_space<vmem>>, vector<1x8x32xf32>,
    return
  }
  func.func @transform_0(%arg0: i32) -> (i32, i32, i32) {
    %c0_i32 = arith.constant 0 : i32
    %c0_i32_0 = arith.constant 0 : i32
    %c0_i32_1 = arith.constant 0 : i32
    return %arg0, %c0_i32, %c0_i32_0 : i32, i32, i32
  }
  func.func @transform_1(%arg0: i32) -> (i32, i32, i32) {
    %c0_i32 = arith.constant 0 : i32
    %c0_i32_0 = arith.constant 0 : i32
    %c0_i32_1 = arith.constant 0 : i32
    return %arg0, %c0_i32, %c0_i32_0 : i32, i32, i32
  }
  func.func @transform_2(%arg0: i32) -> (i32, i32) {
    %c0_i32 = arith.constant 0 : i32
    %c0_i32_0 = arith.constant 0 : i32
    %c0_i32_1 = arith.constant 0 : i32
    return %c0_i32, %c0_i32_0 : i32, i32
  }
  func.func @transform_3(%arg0: i32) -> (i32, i32) {
    %c0_i32 = arith.constant 0 : i32
    %c0_i32_0 = arith.constant 0 : i32
    %c0_i32_1 = arith.constant 0 : i32
    return %c0_i32, %c0_i32_0 : i32, i32
  }
  func.func @transform_4(%arg0: i32) -> (i32, i32) {
    %c0_i32 = arith.constant 0 : i32
    %c0_i32_0 = arith.constant 0 : i32
    %c0_i32_1 = arith.constant 0 : i32
    return %c0_i32, %c0_i32_0 : i32, i32
  }
  func.func @transform_5(%arg0: i32) -> (i32, i32) {
    %c0_i32 = arith.constant 0 : i32
    %c0_i32_0 = arith.constant 0 : i32
    %c0_i32_1 = arith.constant 0 : i32
    return %c0_i32, %c0_i32_0 : i32, i32
  }
  func.func @transform_6(%arg0: i32) -> (i32, i32, i32) {
    %c0_i32 = arith.constant 0 : i32
    %c0_i32_0 = arith.constant 0 : i32
    %c0_i32_1 = arith.constant 0 : i32
    return %arg0, %c0_i32, %c0_i32_0 : i32, i32, i32
  }
}

</mosaic_0001>

<llo_original>
// kernel: tpu_custom_call.1
$region0: #{tpu_custom_call.1}
  #allocation0 [shape = 'u32[]', space=smem, size = 0x4, offset = 0x4, fixed_abs, tag = 'smem constant byte address 0x4 - core index']
  #allocation1 [shape = 'u32[72,128]{1,0:T(1,128)}', space=vmem, size = 0x9000, scoped, tag = 'internal scratch']
  %s0 = inlined_call_operand.hbm [shape: f32[2,8,32], index: 0, kind: input, shape index: {}]
  %s1 = inlined_call_operand.vmem [shape: f32[2,24,32], index: 1, kind: input, shape index: {}]
  %s2 = inlined_call_operand.vmem [shape: f32[32,32], index: 2, kind: input, shape index: {}]
  %s3 = inlined_call_operand.vmem [shape: f32[32,16], index: 3, kind: input, shape index: {}]
  %s4 = inlined_call_operand.vmem [shape: f32[32,16], index: 4, kind: input, shape index: {}]
  %s5 = inlined_call_operand.hbm [shape: f32[32,32], index: 5, kind: input, shape index: {}]
  %s6 = inlined_call_operand.hbm [shape: f32[2,8,32], index: 6, kind: output, shape index: {}]
  %s7 = sld [smem:[#allocation0]]
  $region65: #{tpu_custom_call.1} parent=0
    _
  %s9 = ssub.s32 1, %s7
  %s10 = scalar_select 0, %s9, %s7
  $region1: #{tpu_custom_call.1} parent=0
    #allocation2 [shape = 'u8[8192]{0}', space=vmem, size = 0x2000, scoped, tag = 'input window, operand 0']
    #allocation3 [shape = 's32[2]{0}', space=sflag, size = 0x8, scoped, tag = 'scoped memory for tpu_custom_call.1']
    #allocation4 [shape = 's32[2]{0}', space=sflag, size = 0x8, scoped, tag = 'scoped memory for tpu_custom_call.1']
    #allocation5 [shape = 'u8[16384]{0}', space=vmem, size = 0x4000, scoped, tag = 'input window, operand 5, single buffered']
    #allocation6 [shape = 's32[1]{0}', space=sflag, size = 0x4, scoped, tag = 'scoped memory for tpu_custom_call.1']
    #allocation7 [shape = 'u8[8192]{0}', space=vmem, size = 0x2000, scoped, tag = 'output window, operand 0']
    %11 = vsyncpa [#allocation3], 0
    %s12 = scalar_lea.sflag [#allocation3], 1
    %13 = vsyncpa %s12, 0
    %14 = vsyncpa [#allocation6], 0
    %15 = vsyncpa [#allocation4], 0
    %s16 = scalar_lea.sflag [#allocation4], 1
    %17 = vsyncpa %s16, 0
    loop: start=0, step=1, limit=4
    $region2: #{tpu_custom_call.1} parent=1 // loop_pre_header
      _
    $region3: #{tpu_custom_call.1} parent=1 // loop_header
      %s19 = sphi 0, %s23
      %p20 = scmp.ge.s32.totalorder %s19, 4
      %s29 = sphi 0, %s31
      %s32 = sphi 0, %s29
      %s33 = sphi 0, %s32
      %s49 = sphi 0, %s33
      %s55 = sphi 0, %s57
      %s58 = sphi 0, %s55
      %s59 = sphi 0, %s58
      %s75 = sphi 0, %s59
      %s79 = sphi 0, %s79
      %s81 = sphi 0, %s79
      %s82 = sphi 0, %s81
      %s96 = sphi 0, %s82
      %s100 = sphi 0, %s100
      %s102 = sphi 0, %s100
      %s103 = sphi 0, %s102
      %s117 = sphi 0, %s103
      %s121 = sphi 0, %s121
      %s123 = sphi 0, %s121
      %s124 = sphi 0, %s123
      %s138 = sphi 0, %s124
      %s142 = sphi 0, %s142
      %s144 = sphi 0, %s142
      %s145 = sphi 0, %s144
      %s159 = sphi 0, %s145
      %s165 = sphi 0, %s167
      %s168 = sphi 0, %s165
      %s169 = sphi 0, %s168
      %s185 = sphi 0, %s169
    $region4: #{tpu_custom_call.1} parent=1 // loop_header_branch
      %22 = sbr.rel (%p20) target = $region8
    $region5: #{tpu_custom_call.1} parent=1 // loop_body
      %s24 = ssub.s32 %s19, 1
      %s25 = ssub.s32 %s19, 2
      %s26 = sadd.s32 %s19, 1
      %s27 = ssub.s32 %s19, %s26
      %p28 = scmp.eq.s32.totalorder %s27, 0
      %s30 = sadd.s32 %s29, 1
      %s31 = scalar_select %p28, %s29, %s30
      %p34 = pneg %p28
      %p35 = scmp.eq.s32.totalorder %s19, 1
      %p36 = por %p34, %p35
      %p37 = scmp.ne.s32.totalorder %s29, %s32
      %p38 = scmp.eq.s32.totalorder %s19, 0
      %p39 = por %p37, %p38
      %p40 = scmp.ne.s32.totalorder %s29, %s32
      %p41 = scmp.eq.s32.totalorder %s24, 1
      %p42 = por %p40, %p41
      %p43 = scmp.ne.s32.totalorder %s32, %s33
      %p44 = scmp.eq.s32.totalorder %s24, 0
      %p45 = por %p43, %p44
      %p46 = scmp.ne.s32.totalorder %s32, %s33
      %p47 = scmp.eq.s32.totalorder %s25, 1
      %p48 = por %p46, %p47
      %p50 = scmp.ne.s32.totalorder %s33, %s49
      %p51 = scmp.eq.s32.totalorder %s25, 0
      %p52 = por %p50, %p51
      %s53 = ssub.s32 %s19, %s26
      %p54 = scmp.eq.s32.totalorder %s53, 0
      %s56 = sadd.s32 %s55, 1
      %s57 = scalar_select %p54, %s55, %s56
      %p60 = pneg %p54
      %p61 = scmp.eq.s32.totalorder %s19, 1
      %p62 = por %p60, %p61
      %p63 = scmp.ne.s32.totalorder %s55, %s58
      %p64 = scmp.eq.s32.totalorder %s19, 0
      %p65 = por %p63, %p64
      %p66 = scmp.ne.s32.totalorder %s55, %s58
      %p67 = scmp.eq.s32.totalorder %s24, 1
      %p68 = por %p66, %p67
      %p69 = scmp.ne.s32.totalorder %s58, %s59
      %p70 = scmp.eq.s32.totalorder %s24, 0
      %p71 = por %p69, %p70
      %p72 = scmp.ne.s32.totalorder %s58, %s59
      %p73 = scmp.eq.s32.totalorder %s25, 1
      %p74 = por %p72, %p73
      %p76 = scmp.ne.s32.totalorder %s59, %s75
      %p77 = scmp.eq.s32.totalorder %s25, 0
      %p78 = por %p76, %p77
      %s80 = sadd.s32 %s79, 1
      %p83 = scmp.eq.s32.totalorder %s19, 1
      %p84 = scmp.ne.s32.totalorder %s79, %s81
      %p85 = scmp.eq.s32.totalorder %s19, 0
      %p86 = por %p84, %p85
      %p87 = scmp.ne.s32.totalorder %s79, %s81
      %p88 = scmp.eq.s32.totalorder %s24, 1
      %p89 = por %p87, %p88
      %p90 = scmp.ne.s32.totalorder %s81, %s82
      %p91 = scmp.eq.s32.totalorder %s24, 0
      %p92 = por %p90, %p91
      %p93 = scmp.ne.s32.totalorder %s81, %s82
      %p94 = scmp.eq.s32.totalorder %s25, 1
      %p95 = por %p93, %p94
      %p97 = scmp.ne.s32.totalorder %s82, %s96
      %p98 = scmp.eq.s32.totalorder %s25, 0
      %p99 = por %p97, %p98
      %s101 = sadd.s32 %s100, 1
      %p104 = scmp.eq.s32.totalorder %s19, 1
      %p105 = scmp.ne.s32.totalorder %s100, %s102
      %p106 = scmp.eq.s32.totalorder %s19, 0
      %p107 = por %p105, %p106
      %p108 = scmp.ne.s32.totalorder %s100, %s102
      %p109 = scmp.eq.s32.totalorder %s24, 1
      %p110 = por %p108, %p109
      %p111 = scmp.ne.s32.totalorder %s102, %s103
      %p112 = scmp.eq.s32.totalorder %s24, 0
      %p113 = por %p111, %p112
      %p114 = scmp.ne.s32.totalorder %s102, %s103
      %p115 = scmp.eq.s32.totalorder %s25, 1
      %p116 = por %p114, %p115
      %p118 = scmp.ne.s32.totalorder %s103, %s117
      %p119 = scmp.eq.s32.totalorder %s25, 0
      %p120 = por %p118, %p119
      %s122 = sadd.s32 %s121, 1
      %p125 = scmp.eq.s32.totalorder %s19, 1
      %p126 = scmp.ne.s32.totalorder %s121, %s123
      %p127 = scmp.eq.s32.totalorder %s19, 0
      %p128 = por %p126, %p127
      %p129 = scmp.ne.s32.totalorder %s121, %s123
      %p130 = scmp.eq.s32.totalorder %s24, 1
      %p131 = por %p129, %p130
      %p132 = scmp.ne.s32.totalorder %s123, %s124
      %p133 = scmp.eq.s32.totalorder %s24, 0
      %p134 = por %p132, %p133
      %p135 = scmp.ne.s32.totalorder %s123, %s124
      %p136 = scmp.eq.s32.totalorder %s25, 1
      %p137 = por %p135, %p136
      %p139 = scmp.ne.s32.totalorder %s124, %s138
      %p140 = scmp.eq.s32.totalorder %s25, 0
      %p141 = por %p139, %p140
      %s143 = sadd.s32 %s142, 1
      %p146 = scmp.eq.s32.totalorder %s19, 1
      %p147 = scmp.ne.s32.totalorder %s142, %s144
      %p148 = scmp.eq.s32.totalorder %s19, 0
      %p149 = por %p147, %p148
      %p150 = scmp.ne.s32.totalorder %s142, %s144
      %p151 = scmp.eq.s32.totalorder %s24, 1
      %p152 = por %p150, %p151
      %p153 = scmp.ne.s32.totalorder %s144, %s145
      %p154 = scmp.eq.s32.totalorder %s24, 0
      %p155 = por %p153, %p154
      %p156 = scmp.ne.s32.totalorder %s144, %s145
      %p157 = scmp.eq.s32.totalorder %s25, 1
      %p158 = por %p156, %p157
      %p160 = scmp.ne.s32.totalorder %s145, %s159
      %p161 = scmp.eq.s32.totalorder %s25, 0
      %p162 = por %p160, %p161
      %s163 = ssub.s32 %s19, %s26
      %p164 = scmp.eq.s32.totalorder %s163, 0
      %s166 = sadd.s32 %s165, 1
      %s167 = scalar_select %p164, %s165, %s166
      %p170 = pneg %p164
      %p171 = scmp.eq.s32.totalorder %s19, 1
      %p172 = por %p170, %p171
      %p173 = scmp.ne.s32.totalorder %s165, %s168
      %p174 = scmp.eq.s32.totalorder %s19, 0
      %p175 = por %p173, %p174
      %p176 = scmp.ne.s32.totalorder %s165, %s168
      %p177 = scmp.eq.s32.totalorder %s24, 1
      %p178 = por %p176, %p177
      %p179 = scmp.ne.s32.totalorder %s168, %s169
      %p180 = scmp.eq.s32.totalorder %s24, 0
      %p181 = por %p179, %p180
      %p182 = scmp.ne.s32.totalorder %s168, %s169
      %p183 = scmp.eq.s32.totalorder %s25, 1
      %p184 = por %p182, %p183
      %p186 = scmp.ne.s32.totalorder %s169, %s185
      %p187 = scmp.eq.s32.totalorder %s25, 0
      %p188 = por %p186, %p187
      %p189 = scmp.le.s32.totalorder 1, %s19
      %p190 = scmp.lt.s32.totalorder %s19, 3
      %p191 = pnand %p189, %p190
      %p192 = pneg %p191
      // Predicated region
      $region9: #{tpu_custom_call.1} parent=5 // pred_check
        _
      $region10: #{tpu_custom_call.1} parent=5 // pred_check_branch
        %194 = sbr.rel (%p191) target = $region12
      $region11: #{tpu_custom_call.1} parent=5 // pred_region
        %s195 = ssub.s32 %s19, 1
        // Predicated region
        $region13: #{tpu_custom_call.1} parent=11 // pred_check
          %p196 = pneg %p92
        $region14: #{tpu_custom_call.1} parent=11 // pred_check_branch
          %198 = sbr.rel (%p196) target = $region16
        $region15: #{tpu_custom_call.1} parent=11 // pred_region
          _
        $region16: #{tpu_custom_call.1} parent=11 // pred_fallthru
          _
        // Predicated region
        $region17: #{tpu_custom_call.1} parent=11 // pred_check
          %p199 = pneg %p113
        $region18: #{tpu_custom_call.1} parent=11 // pred_check_branch
          %201 = sbr.rel (%p199) target = $region20
        $region19: #{tpu_custom_call.1} parent=11 // pred_region
          _
        $region20: #{tpu_custom_call.1} parent=11 // pred_fallthru
          _
        // Predicated region
        $region21: #{tpu_custom_call.1} parent=11 // pred_check
          %p202 = pneg %p134
        $region22: #{tpu_custom_call.1} parent=11 // pred_check_branch
          %204 = sbr.rel (%p202) target = $region24
        $region23: #{tpu_custom_call.1} parent=11 // pred_region
          _
        $region24: #{tpu_custom_call.1} parent=11 // pred_fallthru
          _
        // Predicated region
        $region25: #{tpu_custom_call.1} parent=11 // pred_check
          %p205 = pneg %p155
        $region26: #{tpu_custom_call.1} parent=11 // pred_check_branch
          %207 = sbr.rel (%p205) target = $region28
        $region27: #{tpu_custom_call.1} parent=11 // pred_region
          %209 = vsyncadd [#allocation6], 0
          %s210 = sshll.u32 %s5, 4
          %s211 = int_to_ptr.hbm [resolvable:$true] %s210
          %s212 = sshll.u32 [#allocation5], 4
          %s213 = int_to_ptr.vmem [resolvable:$true] %s212
          %218 = dma.hbm_to_vmem [thread:$0]  %s211, 512, %s213, [#allocation6], 128, 128, 8
        $region28: #{tpu_custom_call.1} parent=11 // pred_fallthru
          _
      $region12: #{tpu_custom_call.1} parent=5 // pred_fallthru
        _
      %p219 = scmp.lt.s32.totalorder %s19, 2
      // Predicated region
      $region29: #{tpu_custom_call.1} parent=5 // pred_check
        %p220 = pneg %p219
      $region30: #{tpu_custom_call.1} parent=5 // pred_check_branch
        %222 = sbr.rel (%p220) target = $region32
      $region31: #{tpu_custom_call.1} parent=5 // pred_region
        // Predicated region
        $region33: #{tpu_custom_call.1} parent=31 // pred_check
          %p223 = pneg %p39
        $region34: #{tpu_custom_call.1} parent=31 // pred_check_branch
          %225 = sbr.rel (%p223) target = $region36
        $region35: #{tpu_custom_call.1} parent=31 // pred_region
          %s226 = sand.u32 %s29, 1
          %s227 = scalar_lea.sflag [#allocation3], %s226
          %s228 = sand.u32 %s29, 1
          %s229 = smul.addr %s228, 8
          %s230 = scalar_lea.vmem [#allocation2], %s229
          %232 = vsyncadd %s227, 0
          %s233 = smul.addr %s19, 8
          %s234 = scalar_lea.hbm %s0, %s233
          %s236 = sshll.u32 %s234, 4
          %s237 = int_to_ptr.hbm [resolvable:$true] %s236
          %s238 = sshll.u32 %s230, 4
          %s239 = int_to_ptr.vmem [resolvable:$true] %s238
          %241 = dma.hbm_to_vmem [thread:$0]  %s237, 128, %s239, %s227
        $region36: #{tpu_custom_call.1} parent=31 // pred_fallthru
          _
        // Predicated region
        $region37: #{tpu_custom_call.1} parent=31 // pred_check
          %p242 = pneg %p65
        $region38: #{tpu_custom_call.1} parent=31 // pred_check_branch
          %244 = sbr.rel (%p242) target = $region40
        $region39: #{tpu_custom_call.1} parent=31 // pred_region
          %p245 = scmp.lt.s32.totalorder %s19, 1
          %s246 = scalar_select %p245, %s19, 1
          %s247 = smul.addr %s246, 3
          %s248 = smul.addr %s247, 8
          %s249 = scalar_lea.vmem %s1, %s248
        $region40: #{tpu_custom_call.1} parent=31 // pred_fallthru
          _
      $region32: #{tpu_custom_call.1} parent=5 // pred_fallthru
        _
      %p250 = scmp.le.s32.totalorder 1, %s19
      %p251 = scmp.lt.s32.totalorder %s19, 3
      %p252 = pnand %p250, %p251
      %p253 = pneg %p252
      // Predicated region
      $region41: #{tpu_custom_call.1} parent=5 // pred_check
        _
      $region42: #{tpu_custom_call.1} parent=5 // pred_check_branch
        %255 = sbr.rel (%p252) target = $region44
      $region43: #{tpu_custom_call.1} parent=5 // pred_region
        %s256 = ssub.s32 %s19, 1
        %s257 = sand.u32 %s32, 1
        %s258 = scalar_lea.sflag [#allocation3], %s257
        %s259 = sand.u32 %s32, 1
        %s260 = smul.addr %s259, 8
        %s261 = scalar_lea.vmem [#allocation2], %s260
        // Predicated region
        $region45: #{tpu_custom_call.1} parent=43 // pred_check
          %p262 = pneg %p45
        $region46: #{tpu_custom_call.1} parent=43 // pred_check_branch
          %264 = sbr.rel (%p262) target = $region48
        $region47: #{tpu_custom_call.1} parent=43 // pred_region
          %266 = dma.done %s258, 128
        $region48: #{tpu_custom_call.1} parent=43 // pred_fallthru
          _
        // Predicated region
        $region49: #{tpu_custom_call.1} parent=43 // pred_check
          %p267 = pneg %p155
        $region50: #{tpu_custom_call.1} parent=43 // pred_check_branch
          %269 = sbr.rel (%p267) target = $region52
        $region51: #{tpu_custom_call.1} parent=43 // pred_region
          %271 = dma.done [#allocation6], 512
        $region52: #{tpu_custom_call.1} parent=43 // pred_fallthru
          _
        %s272 = sand.u32 %s32, 1
        %s273 = scalar_lea.sflag [#allocation3], %s272
        %s274 = sand.u32 %s32, 1
        %s275 = smul.addr %s274, 8
        %s276 = scalar_lea.vmem [#allocation2], %s275
        %p277 = pneg %p45
        %p278 = pneg %p42
        %p279 = scmp.lt.s32.totalorder %s24, 1
        %s280 = scalar_select %p279, %s24, 1
        %s281 = smul.addr %s280, 3
        %s282 = smul.addr %s281, 8
        %s283 = scalar_lea.vmem %s1, %s282
        %p284 = pneg %p71
        %p285 = pneg %p68
        %p286 = pneg %p92
        %p287 = pneg %p89
        %p288 = pneg %p113
        %p289 = pneg %p110
        %p290 = pneg %p134
        %p291 = pneg %p131
        %p292 = pneg %p155
        %p293 = pneg %p152
        %p294 = pneg %p181
        %p295 = pneg %p178
        %s296 = sand.u32 %s168, 1
        %s297 = scalar_lea.sflag [#allocation4], %s296
        %s298 = sand.u32 %s168, 1
        %s299 = smul.addr %s298, 8
        %s300 = scalar_lea.vmem [#allocation7], %s299
        %p301 = scmp.lt.s32.totalorder %s24, 1
        %s302 = scalar_select %p301, %s24, 1
        %s303 = smul.addr %s302, 3
        %s304 = smul.addr %s303, 8
        %s305 = scalar_lea.vmem %s1, %s304
        %v306 = vld [vmem:[%s261] sm:$0xff]
        %v307 = vld [vmem:[%s305] sm:$0xff]
        %v308 = vld [vmem:[%s305 + $0x8] sm:$0xff]
        %v309 = vld [vmem:[%s305 + $0x10] sm:$0xff]
        %v310 = vld [vmem:[%s2] sm:$0xff]
        %v311 = vld [vmem:[%s2 + $0x8] sm:$0xff]
        %v312 = vld [vmem:[%s2 + $0x10] sm:$0xff]
        %v313 = vld [vmem:[%s2 + $0x18] sm:$0xff]
        %vm314 = vcmask 261120
        %v316 = vsel %vm314, %v306, 0
        %318 = vmatpush.msra.mxu0 0.0
        %319 = vmatpush.msra.mxu0 0.0
        %320 = vmatpush.msra.mxu0 0.0
        %321 = vmatpush.msra.mxu0 0.0
        %322 = vmatpush.msra.mxu0 0.0
        %323 = vmatpush.msra.mxu0 0.0
        %324 = vmatpush.msra.mxu0 0.0
        %325 = vmatpush.msra.mxu0 0.0
        %326 = vmatpush.msra.mxu0 0.0
        %327 = vmatpush.msra.mxu0 0.0
        %328 = vmatpush.msra.mxu0 0.0
        %329 = vmatpush.msra.mxu0 0.0
        %330 = vmatpush.msra.mxu0 %v313
        %331 = vmatpush.msra.mxu0 %v312
        %332 = vmatpush.msra.mxu0 %v311
        %333 = vmatpush.msra.mxu0 %v310
        %334 = vmatmul.f32.gmra.mxu0 %v316
        %v335 = vpop.f32.mrf.mxu0
        %v336 = vadd.f32 0.0, %v335
        %337 = vdwg.mxu0
        %v338 = vld [vmem:[%s3] sm:$0xff]
        %v339 = vld [vmem:[%s3 + $0x8] sm:$0xff]
        %v340 = vld [vmem:[%s3 + $0x10] sm:$0xff]
        %v341 = vld [vmem:[%s3 + $0x18] sm:$0xff]
        %v343 = vsel %vm314, %v307, 0
        %v346 = vsel %vm314, %v308, 0
        %v349 = vsel %vm314, %v309, 0
        %351 = vmatpush.msra.mxu0 0.0
        %352 = vmatpush.msra.mxu0 0.0
        %353 = vmatpush.msra.mxu0 0.0
        %354 = vmatpush.msra.mxu0 0.0
        %355 = vmatpush.msra.mxu0 0.0
        %356 = vmatpush.msra.mxu0 0.0
        %357 = vmatpush.msra.mxu0 0.0
        %358 = vmatpush.msra.mxu0 0.0
        %359 = vmatpush.msra.mxu0 0.0
        %360 = vmatpush.msra.mxu0 0.0
        %361 = vmatpush.msra.mxu0 0.0
        %362 = vmatpush.msra.mxu0 0.0
        %363 = vmatpush.msra.mxu0 %v341
        %364 = vmatpush.msra.mxu0 %v340
        %365 = vmatpush.msra.mxu0 %v339
        %366 = vmatpush.msra.mxu0 %v338
        %367 = vmatmul.f32.gmra.mxu0 %v343
        %v368 = vpop.f32.mrf.mxu0
        %v369 = vadd.f32 0.0, %v368
        %370 = vmatmul.f32.gmra.mxu0 %v346
        %v371 = vpop.f32.mrf.mxu0
        %v372 = vadd.f32 0.0, %v371
        %373 = vmatmul.f32.gmra.mxu0 %v349
        %v374 = vpop.f32.mrf.mxu0
        %v375 = vadd.f32 0.0, %v374
        %376 = vdwg.mxu0
        %v377 = vld [vmem:[%s4] sm:$0xff]
        %v378 = vld [vmem:[%s4 + $0x8] sm:$0xff]
        %v379 = vld [vmem:[%s4 + $0x10] sm:$0xff]
        %v380 = vld [vmem:[%s4 + $0x18] sm:$0xff]
        %381 = vmatpush.msra.mxu0 0.0
        %382 = vmatpush.msra.mxu0 0.0
        %383 = vmatpush.msra.mxu0 0.0
        %384 = vmatpush.msra.mxu0 0.0
        %385 = vmatpush.msra.mxu0 0.0
        %386 = vmatpush.msra.mxu0 0.0
        %387 = vmatpush.msra.mxu0 0.0
        %388 = vmatpush.msra.mxu0 0.0
        %389 = vmatpush.msra.mxu0 0.0
        %390 = vmatpush.msra.mxu0 0.0
        %391 = vmatpush.msra.mxu0 0.0
        %392 = vmatpush.msra.mxu0 0.0
        %393 = vmatpush.msra.mxu0 %v380
        %394 = vmatpush.msra.mxu0 %v379
        %395 = vmatpush.msra.mxu0 %v378
        %396 = vmatpush.msra.mxu0 %v377
        %397 = vmatmul.f32.gmra.mxu0 %v343
        %v398 = vpop.f32.mrf.mxu0
        %v399 = vadd.f32 0.0, %v398
        %400 = vmatmul.f32.gmra.mxu0 %v346
        %v401 = vpop.f32.mrf.mxu0
        %v402 = vadd.f32 0.0, %v401
        %403 = vmatmul.f32.gmra.mxu0 %v349
        %v404 = vpop.f32.mrf.mxu0
        %v405 = vadd.f32 0.0, %v404
        %406 = vdwg.mxu0
        %vm407 = vcmask 64512
        %v409 = vsel %vm407, %v336, 0
        %v412 = vsel %vm407, %v369, 0
        %v415 = vsel %vm407, %v372, 0
        %v418 = vsel %vm407, %v375, 0
        %420 = vmatpush.xpose.msra.mxu0 0.0
        %421 = vmatpush.xpose.msra.mxu0 0.0
        %422 = vmatpush.xpose.msra.mxu0 0.0
        %423 = vmatpush.xpose.msra.mxu0 0.0
        %424 = vmatpush.xpose.msra.mxu0 0.0
        %425 = vmatpush.xpose.msra.mxu0 0.0
        %426 = vmatpush.xpose.msra.mxu0 0.0
        %427 = vmatpush.xpose.msra.mxu0 0.0
        %428 = vmatpush.xpose.msra.mxu0 0.0
        %429 = vmatpush.xpose.msra.mxu0 0.0
        %430 = vmatpush.xpose.msra.mxu0 0.0
        %431 = vmatpush.xpose.msra.mxu0 0.0
        %432 = vmatpush.xpose.msra.mxu0 0.0
        %433 = vmatpush.xpose.msra.mxu0 %v418
        %434 = vmatpush.xpose.msra.mxu0 %v415
        %435 = vmatpush.xpose.msra.mxu0 %v412
        %436 = vmatmul.f32.gmra.mxu0 %v409
        %v437 = vpop.f32.mrf.mxu0
        %v438 = vadd.f32 0.0, %v437
        %439 = vdwg.mxu0
        %v440 = vmul.f32 %v438, 0.35355338
        %vm441 = vcmask 195584
        %v442 = vsel %vm441, %v440, -inf
        %443 = vmax.xlane.f32.xlu0 %v442
        %v444 = vpop.xlane.xlu0 %443
        %v445 = vsub.f32 %v440, %v444
        %v446 = vmul.f32 %v445, 1.442695
        %v447 = vpow.pop %v446
        %v448 = vsel %vm441, %v447, 0.0
        %449 = vadd.xlane.f32.xlu0 %v448
        %v450 = vpop.xlane.xlu0 %449
        %v451 = vrcp.pop %v450
        %v452 = vmul.f32 %v450, %v451
        %v453 = vsub.f32 1.0, %v452
        %v454 = vmul.f32 %v451, %v453
        %v455 = vadd.f32 %v451, %v454
        %vm456 = vweird.f32 %v450
        %vm457 = vweird.f32 %v451
        %vm458 = vmor %vm456, %vm457
        %v459 = vsel %vm458, %v451, %v455
        %v460 = vand.u32 2147483647, %v450
        %vm461 = vcmp.eq.f32.partialorder %v460, 8.507059e+37
        %v462 = vand.u32 %v450, 2147483648
        %v463 = vor.u32 1.1754944e-38, %v462
        %v464 = vsel %vm461, %v463, %v459
        %v465 = vmul.f32 %v447, %v464
        %v467 = vsel %vm441, %v465, 0
        %469 = vmatpush.msra.mxu0 0.0
        %470 = vmatpush.msra.mxu0 0.0
        %471 = vmatpush.msra.mxu0 0.0
        %472 = vmatpush.msra.mxu0 0.0
        %473 = vmatpush.msra.mxu0 0.0
        %474 = vmatpush.msra.mxu0 0.0
        %475 = vmatpush.msra.mxu0 0.0
        %476 = vmatpush.msra.mxu0 0.0
        %477 = vmatpush.msra.mxu0 0.0
        %478 = vmatpush.msra.mxu0 0.0
        %479 = vmatpush.msra.mxu0 0.0
        %480 = vmatpush.msra.mxu0 0.0
        %481 = vmatpush.msra.mxu0 0.0
        %482 = vmatpush.msra.mxu0 %v405
        %483 = vmatpush.msra.mxu0 %v402
        %484 = vmatpush.msra.mxu0 %v399
        %485 = vmatmul.f32.gmra.mxu0 %v467
        %v486 = vpop.f32.mrf.mxu0
        %v487 = vadd.f32 0.0, %v486
        %488 = vdwg.mxu0
        %489 = vrot.lane.b32.xlu0 %v336, 120
        %v490 = vpop.permute.xlu0 %489
        %v491 = vsel %vm407, %v490, 0
        %493 = vmatpush.xpose.msra.mxu0 0.0
        %494 = vmatpush.xpose.msra.mxu0 0.0
        %495 = vmatpush.xpose.msra.mxu0 0.0
        %496 = vmatpush.xpose.msra.mxu0 0.0
        %497 = vmatpush.xpose.msra.mxu0 0.0
        %498 = vmatpush.xpose.msra.mxu0 0.0
        %499 = vmatpush.xpose.msra.mxu0 0.0
        %500 = vmatpush.xpose.msra.mxu0 0.0
        %501 = vmatpush.xpose.msra.mxu0 0.0
        %502 = vmatpush.xpose.msra.mxu0 0.0
        %503 = vmatpush.xpose.msra.mxu0 0.0
        %504 = vmatpush.xpose.msra.mxu0 0.0
        %505 = vmatpush.xpose.msra.mxu0 0.0
        %506 = vmatpush.xpose.msra.mxu0 %v418
        %507 = vmatpush.xpose.msra.mxu0 %v415
        %508 = vmatpush.xpose.msra.mxu0 %v412
        %509 = vmatmul.f32.gmra.mxu0 %v491
        %v510 = vpop.f32.mrf.mxu0
        %v511 = vadd.f32 0.0, %v510
        %512 = vdwg.mxu0
        %v513 = vmul.f32 %v511, 0.35355338
        %v514 = vsel %vm441, %v513, -inf
        %515 = vmax.xlane.f32.xlu0 %v514
        %v516 = vpop.xlane.xlu0 %515
        %v517 = vsub.f32 %v513, %v516
        %v518 = vmul.f32 %v517, 1.442695
        %v519 = vpow.pop %v518
        %v520 = vsel %vm441, %v519, 0.0
        %521 = vadd.xlane.f32.xlu0 %v520
        %v522 = vpop.xlane.xlu0 %521
        %v523 = vrcp.pop %v522
        %v524 = vmul.f32 %v522, %v523
        %v525 = vsub.f32 1.0, %v524
        %v526 = vmul.f32 %v523, %v525
        %v527 = vadd.f32 %v523, %v526
        %vm528 = vweird.f32 %v522
        %vm529 = vweird.f32 %v523
        %vm530 = vmor %vm528, %vm529
        %v531 = vsel %vm530, %v523, %v527
        %v532 = vand.u32 2147483647, %v522
        %vm533 = vcmp.eq.f32.partialorder %v532, 8.507059e+37
        %v534 = vand.u32 %v522, 2147483648
        %v535 = vor.u32 1.1754944e-38, %v534
        %v536 = vsel %vm533, %v535, %v531
        %v537 = vmul.f32 %v519, %v536
        %v539 = vsel %vm441, %v537, 0
        %541 = vmatpush.msra.mxu0 0.0
        %542 = vmatpush.msra.mxu0 0.0
        %543 = vmatpush.msra.mxu0 0.0
        %544 = vmatpush.msra.mxu0 0.0
        %545 = vmatpush.msra.mxu0 0.0
        %546 = vmatpush.msra.mxu0 0.0
        %547 = vmatpush.msra.mxu0 0.0
        %548 = vmatpush.msra.mxu0 0.0
        %549 = vmatpush.msra.mxu0 0.0
        %550 = vmatpush.msra.mxu0 0.0
        %551 = vmatpush.msra.mxu0 0.0
        %552 = vmatpush.msra.mxu0 0.0
        %553 = vmatpush.msra.mxu0 0.0
        %554 = vmatpush.msra.mxu0 %v405
        %555 = vmatpush.msra.mxu0 %v402
        %556 = vmatpush.msra.mxu0 %v399
        %557 = vmatmul.f32.gmra.mxu0 %v539
        %v558 = vpop.f32.mrf.mxu0
        %v559 = vadd.f32 0.0, %v558
        %560 = vdwg.mxu0
        %561 = vrot.lane.b32.xlu0 %v336, 112
        %v562 = vpop.permute.xlu0 %561
        %563 = vrot.lane.b32.xlu0 %v369, 120
        %v564 = vpop.permute.xlu0 %563
        %565 = vrot.lane.b32.xlu0 %v372, 120
        %v566 = vpop.permute.xlu0 %565
        %567 = vrot.lane.b32.xlu0 %v375, 120
        %v568 = vpop.permute.xlu0 %567
        %v569 = vsel %vm407, %v562, 0
        %v571 = vsel %vm407, %v564, 0
        %v573 = vsel %vm407, %v566, 0
        %v575 = vsel %vm407, %v568, 0
        %577 = vmatpush.xpose.msra.mxu0 0.0
        %578 = vmatpush.xpose.msra.mxu0 0.0
        %579 = vmatpush.xpose.msra.mxu0 0.0
        %580 = vmatpush.xpose.msra.mxu0 0.0
        %581 = vmatpush.xpose.msra.mxu0 0.0
        %582 = vmatpush.xpose.msra.mxu0 0.0
        %583 = vmatpush.xpose.msra.mxu0 0.0
        %584 = vmatpush.xpose.msra.mxu0 0.0
        %585 = vmatpush.xpose.msra.mxu0 0.0
        %586 = vmatpush.xpose.msra.mxu0 0.0
        %587 = vmatpush.xpose.msra.mxu0 0.0
        %588 = vmatpush.xpose.msra.mxu0 0.0
        %589 = vmatpush.xpose.msra.mxu0 0.0
        %590 = vmatpush.xpose.msra.mxu0 %v575
        %591 = vmatpush.xpose.msra.mxu0 %v573
        %592 = vmatpush.xpose.msra.mxu0 %v571
        %593 = vmatmul.f32.gmra.mxu0 %v569
        %v594 = vpop.f32.mrf.mxu0
        %v595 = vadd.f32 0.0, %v594
        %596 = vdwg.mxu0
        %v597 = vmul.f32 %v595, 0.35355338
        %v598 = vsel %vm441, %v597, -inf
        %599 = vmax.xlane.f32.xlu0 %v598
        %v600 = vpop.xlane.xlu0 %599
        %v601 = vsub.f32 %v597, %v600
        %v602 = vmul.f32 %v601, 1.442695
        %v603 = vpow.pop %v602
        %v604 = vsel %vm441, %v603, 0.0
        %605 = vadd.xlane.f32.xlu0 %v604
        %v606 = vpop.xlane.xlu0 %605
        %v607 = vrcp.pop %v606
        %v608 = vmul.f32 %v606, %v607
        %v609 = vsub.f32 1.0, %v608
        %v610 = vmul.f32 %v607, %v609
        %v611 = vadd.f32 %v607, %v610
        %vm612 = vweird.f32 %v606
        %vm613 = vweird.f32 %v607
        %vm614 = vmor %vm612, %vm613
        %v615 = vsel %vm614, %v607, %v611
        %v616 = vand.u32 2147483647, %v606
        %vm617 = vcmp.eq.f32.partialorder %v616, 8.507059e+37
        %v618 = vand.u32 %v606, 2147483648
        %v619 = vor.u32 1.1754944e-38, %v618
        %v620 = vsel %vm617, %v619, %v615
        %v621 = vmul.f32 %v603, %v620
        %625 = vrot.lane.b32.xlu0 %v399, 120
        %v626 = vpop.permute.xlu0 %625
        %627 = vrot.lane.b32.xlu0 %v402, 120
        %v628 = vpop.permute.xlu0 %627
        %629 = vrot.lane.b32.xlu0 %v405, 120
        %v630 = vpop.permute.xlu0 %629
        %v635 = vsel %vm441, %v621, 0
        %637 = vmatpush.msra.mxu0 0.0
        %638 = vmatpush.msra.mxu0 0.0
        %639 = vmatpush.msra.mxu0 0.0
        %640 = vmatpush.msra.mxu0 0.0
        %641 = vmatpush.msra.mxu0 0.0
        %642 = vmatpush.msra.mxu0 0.0
        %643 = vmatpush.msra.mxu0 0.0
        %644 = vmatpush.msra.mxu0 0.0
        %645 = vmatpush.msra.mxu0 0.0
        %646 = vmatpush.msra.mxu0 0.0
        %647 = vmatpush.msra.mxu0 0.0
        %648 = vmatpush.msra.mxu0 0.0
        %649 = vmatpush.msra.mxu0 0.0
        %650 = vmatpush.msra.mxu0 %v630
        %651 = vmatpush.msra.mxu0 %v628
        %652 = vmatpush.msra.mxu0 %v626
        %653 = vmatmul.f32.gmra.mxu0 %v635
        %v654 = vpop.f32.mrf.mxu0
        %v655 = vadd.f32 0.0, %v654
        %656 = vdwg.mxu0
        %657 = vrot.lane.b32.xlu0 %v336, 104
        %v658 = vpop.permute.xlu0 %657
        %v659 = vsel %vm407, %v658, 0
        %661 = vmatpush.xpose.msra.mxu0 0.0
        %662 = vmatpush.xpose.msra.mxu0 0.0
        %663 = vmatpush.xpose.msra.mxu0 0.0
        %664 = vmatpush.xpose.msra.mxu0 0.0
        %665 = vmatpush.xpose.msra.mxu0 0.0
        %666 = vmatpush.xpose.msra.mxu0 0.0
        %667 = vmatpush.xpose.msra.mxu0 0.0
        %668 = vmatpush.xpose.msra.mxu0 0.0
        %669 = vmatpush.xpose.msra.mxu0 0.0
        %670 = vmatpush.xpose.msra.mxu0 0.0
        %671 = vmatpush.xpose.msra.mxu0 0.0
        %672 = vmatpush.xpose.msra.mxu0 0.0
        %673 = vmatpush.xpose.msra.mxu0 0.0
        %674 = vmatpush.xpose.msra.mxu0 %v575
        %675 = vmatpush.xpose.msra.mxu0 %v573
        %676 = vmatpush.xpose.msra.mxu0 %v571
        %677 = vmatmul.f32.gmra.mxu0 %v659
        %v678 = vpop.f32.mrf.mxu0
        %v679 = vadd.f32 0.0, %v678
        %680 = vdwg.mxu0
        %v681 = vmul.f32 %v679, 0.35355338
        %v682 = vsel %vm441, %v681, -inf
        %683 = vmax.xlane.f32.xlu0 %v682
        %v684 = vpop.xlane.xlu0 %683
        %v685 = vsub.f32 %v681, %v684
        %v686 = vmul.f32 %v685, 1.442695
        %v687 = vpow.pop %v686
        %v688 = vsel %vm441, %v687, 0.0
        %689 = vadd.xlane.f32.xlu0 %v688
        %v690 = vpop.xlane.xlu0 %689
        %v691 = vrcp.pop %v690
        %v692 = vmul.f32 %v690, %v691
        %v693 = vsub.f32 1.0, %v692
        %v694 = vmul.f32 %v691, %v693
        %v695 = vadd.f32 %v691, %v694
        %vm696 = vweird.f32 %v690
        %vm697 = vweird.f32 %v691
        %vm698 = vmor %vm696, %vm697
        %v699 = vsel %vm698, %v691, %v695
        %v700 = vand.u32 2147483647, %v690
        %vm701 = vcmp.eq.f32.partialorder %v700, 8.507059e+37
        %v702 = vand.u32 %v690, 2147483648
        %v703 = vor.u32 1.1754944e-38, %v702
        %v704 = vsel %vm701, %v703, %v699
        %v705 = vmul.f32 %v687, %v704
        %v707 = vsel %vm441, %v705, 0
        %709 = vmatpush.msra.mxu0 0.0
        %710 = vmatpush.msra.mxu0 0.0
        %711 = vmatpush.msra.mxu0 0.0
        %712 = vmatpush.msra.mxu0 0.0
        %713 = vmatpush.msra.mxu0 0.0
        %714 = vmatpush.msra.mxu0 0.0
        %715 = vmatpush.msra.mxu0 0.0
        %716 = vmatpush.msra.mxu0 0.0
        %717 = vmatpush.msra.mxu0 0.0
        %718 = vmatpush.msra.mxu0 0.0
        %719 = vmatpush.msra.mxu0 0.0
        %720 = vmatpush.msra.mxu0 0.0
        %721 = vmatpush.msra.mxu0 0.0
        %722 = vmatpush.msra.mxu0 %v630
        %723 = vmatpush.msra.mxu0 %v628
        %724 = vmatpush.msra.mxu0 %v626
        %725 = vmatmul.f32.gmra.mxu0 %v707
        %v726 = vpop.f32.mrf.mxu0
        %v727 = vadd.f32 0.0, %v726
        %728 = vdwg.mxu0
        %730 = vrot.lane.b32.xlu0 %v559, 8
        %v731 = vpop.permute.xlu0 %730
        %734 = vrot.lane.b32.xlu0 %v655, 16
        %v735 = vpop.permute.xlu0 %734
        %738 = vrot.lane.b32.xlu0 %v727, 24
        %v739 = vpop.permute.xlu0 %738
        %v741 = vsel %vm407, %v487, %v731
        %vm742 = vcmask 130048
        %v743 = vsel %vm742, %v741, %v735
        %v744 = vsel %vm441, %v743, %v739
        %v745 = vld [vmem:[#allocation5] sm:$0xff]
        %v746 = vld [vmem:[#allocation5 + $0x8] sm:$0xff]
        %v747 = vld [vmem:[#allocation5 + $0x10] sm:$0xff]
        %v748 = vld [vmem:[#allocation5 + $0x18] sm:$0xff]
        %v750 = vsel %vm314, %v744, 0
        %752 = vmatpush.msra.mxu0 0.0
        %753 = vmatpush.msra.mxu0 0.0
        %754 = vmatpush.msra.mxu0 0.0
        %755 = vmatpush.msra.mxu0 0.0
        %756 = vmatpush.msra.mxu0 0.0
        %757 = vmatpush.msra.mxu0 0.0
        %758 = vmatpush.msra.mxu0 0.0
        %759 = vmatpush.msra.mxu0 0.0
        %760 = vmatpush.msra.mxu0 0.0
        %761 = vmatpush.msra.mxu0 0.0
        %762 = vmatpush.msra.mxu0 0.0
        %763 = vmatpush.msra.mxu0 0.0
        %764 = vmatpush.msra.mxu0 %v748
        %765 = vmatpush.msra.mxu0 %v747
        %766 = vmatpush.msra.mxu0 %v746
        %767 = vmatpush.msra.mxu0 %v745
        %768 = vmatmul.f32.gmra.mxu0 %v750
        %v769 = vpop.f32.mrf.mxu0
        %v770 = vadd.f32 0.0, %v769
        %771 = vdwg.mxu0
        %772 = vst.msk [vmem:[%s300] sm:$0xff] %vm314, %v770
        %s773 = sand.u32 %s168, 1
        %s774 = scalar_lea.sflag [#allocation4], %s773
        %s775 = sand.u32 %s168, 1
        %s776 = smul.addr %s775, 8
        %s777 = scalar_lea.vmem [#allocation7], %s776
        // Predicated region
        $region53: #{tpu_custom_call.1} parent=43 // pred_check
          %p778 = pneg %p178
        $region54: #{tpu_custom_call.1} parent=43 // pred_check_branch
          %780 = sbr.rel (%p778) target = $region56
        $region55: #{tpu_custom_call.1} parent=43 // pred_region
          %782 = vsyncadd %s774, 0
          %s783 = smul.addr %s24, 8
          %s784 = scalar_lea.hbm %s6, %s783
          %s786 = sshll.u32 %s777, 4
          %s787 = int_to_ptr.vmem [resolvable:$true] %s786
          %s788 = sshll.u32 %s784, 4
          %s789 = int_to_ptr.hbm [resolvable:$true] %s788
          %791 = dma.vmem_to_hbm [thread:$0]  %s787, 128, %s789, %s774
        $region56: #{tpu_custom_call.1} parent=43 // pred_fallthru
          _
      $region44: #{tpu_custom_call.1} parent=5 // pred_fallthru
        _
      %p792 = scmp.le.s32.totalorder 2, %s19
      // Predicated region
      $region57: #{tpu_custom_call.1} parent=5 // pred_check
        %p793 = pneg %p792
      $region58: #{tpu_custom_call.1} parent=5 // pred_check_branch
        %795 = sbr.rel (%p793) target = $region60
      $region59: #{tpu_custom_call.1} parent=5 // pred_region
        %s796 = ssub.s32 %s19, 2
        // Predicated region
        $region61: #{tpu_custom_call.1} parent=59 // pred_check
          %p797 = pneg %p184
        $region62: #{tpu_custom_call.1} parent=59 // pred_check_branch
          %799 = sbr.rel (%p797) target = $region64
        $region63: #{tpu_custom_call.1} parent=59 // pred_region
          %s800 = sand.u32 %s169, 1
          %s801 = scalar_lea.sflag [#allocation4], %s800
          %s802 = sand.u32 %s169, 1
          %s803 = smul.addr %s802, 8
          %s804 = scalar_lea.vmem [#allocation7], %s803
          %806 = dma.done %s801, 128
        $region64: #{tpu_custom_call.1} parent=59 // pred_fallthru
          _
      $region60: #{tpu_custom_call.1} parent=5 // pred_fallthru
        _
    $region6: #{tpu_custom_call.1} parent=1 // loop_footer
      %s23 = sadd.s32 1, %s19
    $region7: #{tpu_custom_call.1} parent=1 // loop_footer_branch
      %18 = sbr.rel target = $region3
    $region8: #{tpu_custom_call.1} parent=1 // loop_exit
      _
    %807 = vsyncpa [#allocation3], 1
    %s808 = scalar_lea.sflag [#allocation3], 1
    %809 = vsyncpa %s808, 1
    %810 = vsyncpa [#allocation6], 1
    %811 = vsyncpa [#allocation4], 1
    %s812 = scalar_lea.sflag [#allocation4], 1
    %813 = vsyncpa %s812, 1

</llo_original>
